<compile_context>
chip_gen: v7x
topology: tpu7x:2x2x1
jax: 0.10.0
libtpu: 0.0.40
codegen_flags: <defaults>
</compile_context>

<pallas_src>
import jax
import jax.numpy as jnp
from jax.experimental import pallas as pl
from jax.experimental.pallas import tpu as pltpu


def _linear_add_relu_kernel(x_ref, w_aug_ref, other_ref, o_ref):
    # x:(B, IN)  w_aug:(IN+1, OUT) = [w.T ; b]  other:(B, OUT)  o:(B, OUT)
    in_dim = x_ref.shape[1]
    y = jnp.dot(
        x_ref[...], w_aug_ref[:in_dim, :], preferred_element_type=jnp.float32
    )                                          # MXU: (B, IN) @ (IN, OUT)
    y = y + w_aug_ref[in_dim:in_dim + 1, :]    # bias row (broadcast over B)
    y = y + other_ref[...]
    o_ref[...] = jnp.maximum(y, 0.0).astype(o_ref.dtype)  # ReLU


def pack_linear_params(w, b):
    """One-time (module-construction) prep: nn.Linear (OUT, IN) weight and
    (OUT,) bias -> augmented (IN+1, OUT) operand [w.T ; b]."""
    return jnp.concatenate([w.T, b[None, :]], axis=0)


def _linear_add_relu(x, w_aug, other):
    B, IN = x.shape
    OUT = w_aug.shape[1]

    flops = 2 * B * IN * OUT + 3 * B * OUT           # matmul + bias + add + relu
    bytes_accessed = 4 * (B * IN + (IN + 1) * OUT + 2 * B * OUT)

    vmem = lambda: pl.BlockSpec(memory_space=pltpu.MemorySpace.VMEM)
    return pl.pallas_call(
        _linear_add_relu_kernel,
        out_shape=jax.ShapeDtypeStruct((B, OUT), x.dtype),
        in_specs=[vmem(), vmem(), vmem()],
        out_specs=vmem(),
        # `other` has exactly the output shape/dtype and is consumed: reuse it.
        input_output_aliases={2: 0},
        cost_estimate=pl.CostEstimate(
            flops=flops, transcendentals=0, bytes_accessed=bytes_accessed
        ),
    )(x, w_aug, other)


# Donate `other` so the alias above avoids any defensive copy / extra buffer.
linear_add_relu = jax.jit(_linear_add_relu, donate_argnums=(2,))


if __name__ == "__main__":
    key = jax.random.PRNGKey(0)
    k_x, k_o, k_w, k_b = jax.random.split(key, 4)

    B, IN, OUT = 1, 8, 16  # matches Model: Linear(8, 16), x1 = randn(1, 8)

    # Deterministic synthetic parameters matching nn.Linear(8, 16).
    bound = 1.0 / (IN ** 0.5)
    w = jax.random.uniform(k_w, (OUT, IN), jnp.float32, -bound, bound)
    b = jax.random.uniform(k_b, (OUT,), jnp.float32, -bound, bound)

    # One-time parameter packing (call-invariant, outside the hot path).
    w_aug = jax.block_until_ready(pack_linear_params(w, b))

    x1 = jax.random.normal(k_x, (B, IN), jnp.float32)
    other = jax.random.normal(k_o, (B, OUT), jnp.float32)

    # Reference computed (and materialized) BEFORE the kernel call, because
    # `other` is donated/aliased into the kernel output.
    ref = jnp.maximum(x1 @ w.T + b + other, 0.0)
    ref = jax.block_until_ready(ref)

    out = linear_add_relu(x1, w_aug, other)
    out = jax.block_until_ready(out)

    assert out.shape == (B, OUT)
    assert jnp.allclose(out, ref, atol=1e-5), "mismatch vs reference"

    print("KERNEL_OK")
</pallas_src>

<mosaic_0001>
module attributes {stable_mosaic.version = 11 : i64} {
  func.func @_linear_add_relu_kernel(%arg0: memref<1x8xf32, #tpu.memory_space<vmem>>, %arg1: memref<9x16xf32, #tpu.memory_space<vmem>>, %arg2: memref<1x16xf32, #tpu.memory_space<vmem>>, %arg3: memref<1x16xf32, #tpu.memory_space<vmem>>) attributes {dimension_semantics = [], scalar_prefetch = 0 : i64, scratch_operands = 0 : i64, tpu.core_type = #tpu.core_type<tc>} {
    %c0 = arith.constant 0 : index
    %c0_0 = arith.constant 0 : index
    %0 = vector.load %arg0[%c0, %c0_0] : memref<1x8xf32, #tpu.memory_space<vmem>>, vector<1x8xf32>
    %c0_1 = arith.constant 0 : index
    %c0_2 = arith.constant 0 : index
    %1 = vector.load %arg1[%c0_1, %c0_2] : memref<9x16xf32, #tpu.memory_space<vmem>>, vector<8x16xf32>
    %cst = arith.constant dense<0.000000e+00> : vector<1x16xf32>
    %2 = tpu.matmul %0, %1, %cst {dimension_numbers = #tpu.dot_dimension_numbers<[1], [0], [0], [1], [0, 0, 1, 1], [], []>} : vector<1x8xf32>, vector<8x16xf32>, vector<1x16xf32> -> vector<1x16xf32>
    %c8 = arith.constant 8 : index
    %c0_3 = arith.constant 0 : index
    %3 = vector.load %arg1[%c8, %c0_3] : memref<9x16xf32, #tpu.memory_space<vmem>>, vector<1x16xf32>
    %4 = arith.addf %2, %3 : vector<1x16xf32>
    %c0_4 = arith.constant 0 : index
    %c0_5 = arith.constant 0 : index
    %5 = vector.load %arg2[%c0_4, %c0_5] : memref<1x16xf32, #tpu.memory_space<vmem>>, vector<1x16xf32>
    %6 = arith.addf %4, %5 : vector<1x16xf32>
    %cst_6 = arith.constant 0.000000e+00 : f32
    %7 = vector.broadcast %cst_6 : f32 to vector<1x16xf32>
    %8 = arith.maximumf %6, %7 : vector<1x16xf32>
    %c0_7 = arith.constant 0 : index
    %c0_8 = arith.constant 0 : index
    %9 = vector.load %arg3[%c0_7, %c0_8] : memref<1x16xf32, #tpu.memory_space<vmem>>, vector<1x16xf32>
    tpu.vector_store %arg3[%c0_7, %c0_8], %8 {strides = array<i32>} : memref<1x16xf32, #tpu.memory_space<vmem>>, vector<1x16xf32>,
    return
  }
}

</mosaic_0001>

<llo_original>
// kernel: _linear_add_relu.1
$region0: #{_linear_add_relu.1}
  #allocation0 [shape = 'u32[]', space=smem, size = 0x4, offset = 0x4, fixed_abs, tag = 'smem constant byte address 0x4 - core index']
  #allocation1 [shape = 'u32[144,128]{1,0:T(1,128)}', space=vmem, size = 0x12000, scoped, tag = 'internal scratch']
  %s0 = inlined_call_operand.hbm [shape: f32[1,8], index: 0, kind: input, shape index: {}]
  %s1 = inlined_call_operand.hbm [shape: f32[9,16], index: 1, kind: input, shape index: {}]
  %s2 = inlined_call_operand.hbm [shape: f32[1,16], index: 2, kind: input, shape index: {}, may-alias: {2,3}]
  %s3 = inlined_call_operand.hbm [shape: f32[1,16], index: 3, kind: output, shape index: {}, may-alias: {2,3}]
  %s4 = sld [smem:[#allocation0]]
  $region34: #{_linear_add_relu.1} parent=0
    _
  %s6 = ssub.s32 1, %s4
  %s7 = scalar_select 0, %s6, %s4
  $region1: #{_linear_add_relu.1} parent=0
    #allocation2 [shape = 'u8[512]{0}', space=vmem, size = 0x400, scoped, tag = 'input window, operand 0, single buffered']
    #allocation3 [shape = 's32[1]{0}', space=sflag, size = 0x4, scoped, tag = 'scoped memory for _linear_add_relu.1']
    #allocation4 [shape = 's32[1]{0}', space=sflag, size = 0x4, scoped, tag = 'scoped memory for _linear_add_relu.1']
    #allocation5 [shape = 'u8[8192]{0}', space=vmem, size = 0x2000, scoped, tag = 'input window, operand 1, single buffered']
    #allocation6 [shape = 's32[1]{0}', space=sflag, size = 0x4, scoped, tag = 'scoped memory for _linear_add_relu.1']
    #allocation7 [shape = 'u8[512]{0}', space=vmem, size = 0x400, scoped, tag = 'input window, operand 2, single buffered']
    #allocation8 [shape = 'u8[512]{0}', space=vmem, size = 0x400, scoped, tag = 'output window, operand 0, single buffered']
    %8 = vsyncpa [#allocation3], 0
    %9 = vsyncpa [#allocation6], 0
    %10 = vsyncpa [#allocation4], 0
    // Predicated region
    $region2: #{_linear_add_relu.1} parent=1 // pred_check
      _
    $region3: #{_linear_add_relu.1} parent=1 // pred_check_branch
      %12 = sbr.rel (0) target = $region5
    $region4: #{_linear_add_relu.1} parent=1 // pred_region
      %s14 = ssub.s32 16, 16
      %15 = vsyncadd [#allocation3], %s14
      %s17 = sshll.u32 [#allocation2], 4
      %s18 = int_to_ptr.vmem [resolvable:$true] %s17
      %20 = dma.hbm_to_vmem [thread:$0]  %s0, 16, %s18, [#allocation3]
    $region5: #{_linear_add_relu.1} parent=1 // pred_fallthru
      _
    // Predicated region
    $region6: #{_linear_add_relu.1} parent=1 // pred_check
      _
    $region7: #{_linear_add_relu.1} parent=1 // pred_check_branch
      %22 = sbr.rel (0) target = $region9
    $region8: #{_linear_add_relu.1} parent=1 // pred_region
      %s24 = ssub.s32 256, 256
      %25 = vsyncadd [#allocation6], %s24
      %s26 = sshll.u32 [#allocation5], 4
      %s27 = int_to_ptr.vmem [resolvable:$true] %s26
      %32 = dma.hbm_to_vmem [thread:$0]  %s1, 256, %s27, [#allocation6], 128, 128, 8
    $region9: #{_linear_add_relu.1} parent=1 // pred_fallthru
      _
    // Predicated region
    $region10: #{_linear_add_relu.1} parent=1 // pred_check
      _
    $region11: #{_linear_add_relu.1} parent=1 // pred_check_branch
      %34 = sbr.rel (0) target = $region13
    $region12: #{_linear_add_relu.1} parent=1 // pred_region
      %s36 = ssub.s32 16, 16
      %37 = vsyncadd [#allocation6], %s36
      %s39 = sshll.u32 [#allocation7], 4
      %s40 = int_to_ptr.vmem [resolvable:$true] %s39
      %42 = dma.hbm_to_vmem [thread:$0]  %s2, 16, %s40, [#allocation6]
    $region13: #{_linear_add_relu.1} parent=1 // pred_fallthru
      _
    // Predicated region
    $region14: #{_linear_add_relu.1} parent=1 // pred_check
      _
    $region15: #{_linear_add_relu.1} parent=1 // pred_check_branch
      %44 = sbr.rel (0) target = $region17
    $region16: #{_linear_add_relu.1} parent=1 // pred_region
      %45 = dma.done [#allocation3], 16
    $region17: #{_linear_add_relu.1} parent=1 // pred_fallthru
      _
    // Predicated region
    $region18: #{_linear_add_relu.1} parent=1 // pred_check
      _
    $region19: #{_linear_add_relu.1} parent=1 // pred_check_branch
      %47 = sbr.rel (0) target = $region21
    $region20: #{_linear_add_relu.1} parent=1 // pred_region
      %48 = dma.done [#allocation6], 256
    $region21: #{_linear_add_relu.1} parent=1 // pred_fallthru
      _
    // Predicated region
    $region22: #{_linear_add_relu.1} parent=1 // pred_check
      _
    $region23: #{_linear_add_relu.1} parent=1 // pred_check_branch
      %50 = sbr.rel (0) target = $region25
    $region24: #{_linear_add_relu.1} parent=1 // pred_region
      %51 = dma.done [#allocation6], 16
    $region25: #{_linear_add_relu.1} parent=1 // pred_fallthru
      _
    %v52 = vld [vmem:[#allocation2] sm:$0x1]
    %v53 = vld [vmem:[#allocation5] sm:$0xff]
    %v54 = vld [vmem:[#allocation5 + $0x8] sm:$0x1]
    %vm55 = vcmask 64512
    %v57 = vsel %vm55, %v52, 0
    %59 = vmatprep.subr.mxu0 0.0
    %60 = vmatpush1.msra.mxu0 %v53
    %61 = vmatprep.subr.mxu0 0.0
    %62 = vmatpush1.msra.mxu0 0.0
    %63 = vmatprep.subr.mxu0 0.0
    %64 = vmatpush1.msra.mxu0 0.0
    %65 = vmatprep.subr.mxu0 0.0
    %66 = vmatpush1.msra.mxu0 0.0
    %67 = vmatprep.subr.mxu0 0.0
    %68 = vmatpush1.msra.mxu0 0.0
    %69 = vmatprep.subr.mxu0 0.0
    %70 = vmatpush1.msra.mxu0 0.0
    %71 = vmatprep.subr.mxu0 0.0
    %72 = vmatpush1.msra.mxu0 0.0
    %73 = vmatprep.subr.mxu0 0.0
    %74 = vmatpush1.msra.mxu0 0.0
    %75 = vmatprep.subr.mxu0 0.0
    %76 = vmatpush1.msra.mxu0 0.0
    %77 = vmatprep.subr.mxu0 0.0
    %78 = vmatpush1.msra.mxu0 0.0
    %79 = vmatprep.subr.mxu0 0.0
    %80 = vmatpush1.msra.mxu0 0.0
    %81 = vmatprep.subr.mxu0 0.0
    %82 = vmatpush1.msra.mxu0 0.0
    %83 = vmatprep.subr.mxu0 0.0
    %84 = vmatpush1.msra.mxu0 0.0
    %85 = vmatprep.subr.mxu0 0.0
    %86 = vmatpush1.msra.mxu0 0.0
    %87 = vmatprep.subr.mxu0 0.0
    %88 = vmatpush1.msra.mxu0 0.0
    %89 = vmatprep.subr.mxu0 0.0
    %90 = vmatpush1.msra.mxu0 0.0
    %91 = vmatprep.subr.mxu0 0.0
    %92 = vmatpush1.msra.mxu0 0.0
    %93 = vmatprep.subr.mxu0 0.0
    %94 = vmatpush1.msra.mxu0 0.0
    %95 = vmatprep.subr.mxu0 0.0
    %96 = vmatpush1.msra.mxu0 0.0
    %97 = vmatprep.subr.mxu0 0.0
    %98 = vmatpush1.msra.mxu0 0.0
    %99 = vmatprep.subr.mxu0 0.0
    %100 = vmatpush1.msra.mxu0 0.0
    %101 = vmatprep.subr.mxu0 0.0
    %102 = vmatpush1.msra.mxu0 0.0
    %103 = vmatprep.subr.mxu0 0.0
    %104 = vmatpush1.msra.mxu0 0.0
    %105 = vmatprep.subr.mxu0 0.0
    %106 = vmatpush1.msra.mxu0 0.0
    %107 = vmatprep.subr.mxu0 0.0
    %108 = vmatpush1.msra.mxu0 0.0
    %109 = vmatprep.subr.mxu0 0.0
    %110 = vmatpush1.msra.mxu0 0.0
    %111 = vmatprep.subr.mxu0 0.0
    %112 = vmatpush1.msra.mxu0 0.0
    %113 = vmatprep.subr.mxu0 0.0
    %114 = vmatpush1.msra.mxu0 0.0
    %115 = vmatprep.subr.mxu0 0.0
    %116 = vmatpush1.msra.mxu0 0.0
    %117 = vmatprep.subr.mxu0 0.0
    %118 = vmatpush1.msra.mxu0 0.0
    %119 = vmatprep.subr.mxu0 0.0
    %120 = vmatpush1.msra.mxu0 0.0
    %121 = vmatprep.subr.mxu0 0.0
    %122 = vmatpush1.msra.mxu0 0.0
    %123 = vmatprep.mubr.f32.mxu0 0.0
    %124 = vmatmul.mubr.f32.gmra.mrb[0].mxu0 %v57
    %v125 = vpop.f32.mrb[0].mxu0
    %v126 = vadd.f32 %v54, %v125
    %v127 = vpop.f32.mrb[0].mxu0
    %128 = vdwg.mxu0
    %v129 = vld [vmem:[#allocation7] sm:$0x1]
    %v130 = vadd.f32 %v126, %v129
    %v131 = vmax.f32 %v130, 0.0
    %vm132 = vcmask 122880
    %133 = vst.msk [vmem:[#allocation8] sm:$0x1] %vm132, %v131
    // Predicated region
    $region26: #{_linear_add_relu.1} parent=1 // pred_check
      _
    $region27: #{_linear_add_relu.1} parent=1 // pred_check_branch
      %135 = sbr.rel (0) target = $region29
    $region28: #{_linear_add_relu.1} parent=1 // pred_region
      %s137 = ssub.s32 16, 16
      %138 = vsyncadd [#allocation4], %s137
      %s140 = sshll.u32 [#allocation8], 4
      %s141 = int_to_ptr.vmem [resolvable:$true] %s140
      %143 = dma.vmem_to_hbm [thread:$0]  %s141, 16, %s3, [#allocation4]
    $region29: #{_linear_add_relu.1} parent=1 // pred_fallthru
      _
    // Predicated region
    $region30: #{_linear_add_relu.1} parent=1 // pred_check
      _
    $region31: #{_linear_add_relu.1} parent=1 // pred_check_branch
      %145 = sbr.rel (0) target = $region33
    $region32: #{_linear_add_relu.1} parent=1 // pred_region
      %146 = dma.done [#allocation4], 16
    $region33: #{_linear_add_relu.1} parent=1 // pred_fallthru
      _
    %147 = vsyncpa [#allocation3], 1
    %148 = vsyncpa [#allocation6], 1
    %149 = vsyncpa [#allocation4], 1

</llo_original>
